<compile_context>
chip_gen: v7x
topology: tpu7x:2x2x1
jax: 0.10.0
libtpu: 0.0.40
codegen_flags: <defaults>
</compile_context>

<pallas_src>
import jax
import jax.numpy as jnp
from jax.experimental import pallas as pl
from jax.experimental.pallas import tpu as pltpu


def _cdiv(a: int, b: int) -> int:
    return (a + b - 1) // b


def _round_up(x: int, m: int) -> int:
    return _cdiv(x, m) * m


def _concat_head_kernel(za_ref, zb_ref, w1a_ref, w1b_ref, b1_ref, w2_ref,
                        b2_ref, out_ref):
    # za/zb : (TMp, P*E)     w1a/w1b : (P*E, P*H)  block-diagonal
    # b1    : (1, P*H) f32   w2      : (P*H, P)    block-diagonal, f32
    # b2    : (1, 1) f32 in SMEM     out : (TMp, P)

    # First linear layer on the *virtual* concat [z_a, z_b] (MXU, f32 acc).
    h = jnp.dot(za_ref[...], w1a_ref[...], preferred_element_type=jnp.float32)
    h = h + jnp.dot(zb_ref[...], w1b_ref[...],
                    preferred_element_type=jnp.float32)
    h = h + b1_ref[...]

    # Dropout(weight_drop): identity in eval/inference mode.
    # TODO(synk): training-mode dropout (random mask + 1/(1-p) scaling) not implemented.

    # Mish(x) = x * tanh(softplus(x)) == x - 2x / (1 + (1 + e^x)^2).
    # Only 2 EUP pushes per element (exp + divide) instead of 3 (exp, log1p,
    # tanh).  Tails are handled naturally: e^x -> inf  => mish -> x;
    # e^x -> 0 => mish -> 0.
    t = 1.0 + jnp.exp(h)
    h = h - (2.0 * h) / (1.0 + t * t)

    # Second linear layer (block-diag, output width P) on the MXU + scalar bias
    # from SMEM.
    out = jnp.dot(h, w2_ref[...], preferred_element_type=jnp.float32)
    out = out + b2_ref[0, 0]
    out_ref[...] = out.astype(out_ref.dtype)


def concat_class_head(z_a, z_b, w1, b1, w2, b2, *, block_rows: int = 8192):
    """Fused ConcatClassHead (num_layers=2) forward.

    z_a, z_b : (B, E)      float32 or bfloat16
    w1       : (2E, H)     (already transposed: PyTorch weight is (H, 2E))
    b1       : (H,)
    w2       : (H, 1)      (PyTorch weight is (1, H))
    b2       : (1,)
    returns  : (B, 1) in the dtype of z_a
    """
    B, E = z_a.shape
    H = w1.shape[1]
    dtype = z_a.dtype

    # Lane-packing factor: pack P batch rows per vreg row so the hidden
    # activation fills (up to) all 128 lanes.
    P = max(1, 128 // H) if H < 128 else 1

    # ---- One-time weight prep (tiny; in a real model do this at init). ----
    eye = jnp.eye(P, dtype=jnp.float32)
    w1a_bd = jnp.kron(eye, w1[:E].astype(jnp.float32)).astype(dtype)   # (P*E, P*H)
    w1b_bd = jnp.kron(eye, w1[E:].astype(jnp.float32)).astype(dtype)   # (P*E, P*H)
    b1_row = jnp.tile(b1.reshape(1, H).astype(jnp.float32), (1, P))    # (1, P*H)
    w2_bd = jnp.kron(eye, w2.reshape(H, 1).astype(jnp.float32))        # (P*H, P)
    b2_2d = b2.reshape(1, 1).astype(jnp.float32)                       # SMEM scalar

    # ---- Balanced batch tiling in *packed* rows. ----
    sub = 8 if jnp.dtype(dtype).itemsize == 4 else 16   # sublane multiple
    Bp = _cdiv(B, P)                                     # packed rows needed
    block_p = max(sub, _round_up(max(1, block_rows // P), sub))
    n_tiles = _cdiv(Bp, block_p)
    if n_tiles == 1 and Bp >= 2 * sub:
        n_tiles = 2          # keep both v7x TensorCores busy
    tm_p = _round_up(_cdiv(Bp, n_tiles), sub)            # balanced tiles
    bp_pad = _round_up(Bp, tm_p)
    b_pad = bp_pad * P

    if b_pad != B:
        pad = ((0, b_pad - B), (0, 0))
        z_a = jnp.pad(z_a, pad)
        z_b = jnp.pad(z_b, pad)
    # Free, row-major-contiguous reshape: packed row r, lane block j holds
    # batch row r*P + j.
    z_a_p = z_a.reshape(bp_pad, P * E)
    z_b_p = z_b.reshape(bp_pad, P * E)

    grid = (bp_pad // tm_p,)

    out = pl.pallas_call(
        _concat_head_kernel,
        out_shape=jax.ShapeDtypeStruct((bp_pad, P), dtype),
        grid=grid,
        in_specs=[
            pl.BlockSpec((tm_p, P * E), lambda i: (i, 0)),   # z_a packed tile
            pl.BlockSpec((tm_p, P * E), lambda i: (i, 0)),   # z_b packed tile
            pl.BlockSpec((P * E, P * H), lambda i: (0, 0)),  # w1_a block-diag (resident)
            pl.BlockSpec((P * E, P * H), lambda i: (0, 0)),  # w1_b block-diag (resident)
            pl.BlockSpec((1, P * H), lambda i: (0, 0)),      # b1 row (f32)
            pl.BlockSpec((P * H, P), lambda i: (0, 0)),      # w2 block-diag (f32)
            pl.BlockSpec((1, 1), lambda i: (0, 0),
                         memory_space=pltpu.MemorySpace.SMEM),  # b2 scalar
        ],
        out_specs=pl.BlockSpec((tm_p, P), lambda i: (i, 0)),
        compiler_params=pltpu.CompilerParams(
            dimension_semantics=("parallel",),
        ),
    )(z_a_p, z_b_p, w1a_bd, w1b_bd, b1_row, w2_bd, b2_2d)

    # (bp_pad, P) row-major == (b_pad, 1) in original batch order.
    return out.reshape(b_pad, 1)[:B]


def reference_forward(z_a, z_b, w1, b1, w2, b2):
    """Pure-JAX reference matching the PyTorch module (eval mode)."""
    z_ab = jnp.concatenate([z_a, z_b], axis=1)
    h = z_ab @ w1 + b1
    h = h * jnp.tanh(jax.nn.softplus(h))  # Mish
    return h @ w2 + b2


if __name__ == "__main__":
    # Small, deterministic config: embedding_size=32, num_layers=2.
    B = 2
    E = 32              # embedding_size
    H = E // 2          # hidden width of first linear

    key = jax.random.PRNGKey(0)
    k_za, k_zb, k_w1, k_b1, k_w2, k_b2 = jax.random.split(key, 6)

    z_a = jax.random.normal(k_za, (B, E), dtype=jnp.float32)
    z_b = jax.random.normal(k_zb, (B, E), dtype=jnp.float32)

    # Deterministic parameter init (uniform +/- 1/sqrt(fan_in), PyTorch-style).
    bound1 = 1.0 / jnp.sqrt(2.0 * E)
    w1 = jax.random.uniform(k_w1, (2 * E, H), jnp.float32, -bound1, bound1)
    b1 = jax.random.uniform(k_b1, (H,), jnp.float32, -bound1, bound1)

    bound2 = 1.0 / jnp.sqrt(float(H))
    w2 = jax.random.uniform(k_w2, (H, 1), jnp.float32, -bound2, bound2)
    b2 = jax.random.uniform(k_b2, (1,), jnp.float32, -bound2, bound2)

    out = concat_class_head(z_a, z_b, w1, b1, w2, b2)
    out = jax.block_until_ready(out)

    ref = reference_forward(z_a, z_b, w1, b1, w2, b2)
    assert out.shape == (B, 1), out.shape
    assert jnp.allclose(out, ref, atol=1e-5, rtol=1e-5), (out, ref)

    print("KERNEL_OK")
</pallas_src>

<mosaic_0001>
module attributes {stable_mosaic.version = 11 : i64} {
  func.func @_concat_head_kernel(%arg0: i32, %arg1: memref<8x256xf32, #tpu.memory_space<vmem>>, %arg2: memref<8x256xf32, #tpu.memory_space<vmem>>, %arg3: memref<256x128xf32, #tpu.memory_space<vmem>>, %arg4: memref<256x128xf32, #tpu.memory_space<vmem>>, %arg5: memref<1x128xf32, #tpu.memory_space<vmem>>, %arg6: memref<128x8xf32, #tpu.memory_space<vmem>>, %arg7: memref<1x1xf32, #tpu.memory_space<smem>>, %arg8: memref<8x8xf32, #tpu.memory_space<vmem>>) attributes {dimension_semantics = [#tpu.dimension_semantics<parallel>], iteration_bounds = array<i64: 1>, scalar_prefetch = 0 : i64, scratch_operands = 0 : i64, tpu.core_type = #tpu.core_type<tc>, window_params = [{transform_indices = @transform_0, window_bounds = array<i64: 8, 256>}, {transform_indices = @transform_1, window_bounds = array<i64: 8, 256>}, {pipeline_mode = #tpu.pipeline_mode<synchronous>, transform_indices = @transform_2, window_bounds = array<i64: 256, 128>}, {pipeline_mode = #tpu.pipeline_mode<synchronous>, transform_indices = @transform_3, window_bounds = array<i64: 256, 128>}, {pipeline_mode = #tpu.pipeline_mode<synchronous>, transform_indices = @transform_4, window_bounds = array<i64: 1, 128>}, {pipeline_mode = #tpu.pipeline_mode<synchronous>, transform_indices = @transform_5, window_bounds = array<i64: 128, 8>}, {transform_indices = @transform_6, window_bounds = array<i64: 1, 1>}, {transform_indices = @transform_7, window_bounds = array<i64: 8, 8>}]} {
    %c0 = arith.constant 0 : index
    %c0_0 = arith.constant 0 : index
    %0 = vector.load %arg1[%c0, %c0_0] : memref<8x256xf32, #tpu.memory_space<vmem>>, vector<8x256xf32>
    %c0_1 = arith.constant 0 : index
    %c0_2 = arith.constant 0 : index
    %1 = vector.load %arg3[%c0_1, %c0_2] : memref<256x128xf32, #tpu.memory_space<vmem>>, vector<256x128xf32>
    %cst = arith.constant dense<0.000000e+00> : vector<8x128xf32>
    %2 = tpu.matmul %0, %1, %cst {dimension_numbers = #tpu.dot_dimension_numbers<[1], [0], [0], [1], [0, 0, 1, 1], [], []>} : vector<8x256xf32>, vector<256x128xf32>, vector<8x128xf32> -> vector<8x128xf32>
    %c0_3 = arith.constant 0 : index
    %c0_4 = arith.constant 0 : index
    %3 = vector.load %arg2[%c0_3, %c0_4] : memref<8x256xf32, #tpu.memory_space<vmem>>, vector<8x256xf32>
    %c0_5 = arith.constant 0 : index
    %c0_6 = arith.constant 0 : index
    %4 = vector.load %arg4[%c0_5, %c0_6] : memref<256x128xf32, #tpu.memory_space<vmem>>, vector<256x128xf32>
    %cst_7 = arith.constant dense<0.000000e+00> : vector<8x128xf32>
    %5 = tpu.matmul %3, %4, %cst_7 {dimension_numbers = #tpu.dot_dimension_numbers<[1], [0], [0], [1], [0, 0, 1, 1], [], []>} : vector<8x256xf32>, vector<256x128xf32>, vector<8x128xf32> -> vector<8x128xf32>
    %6 = arith.addf %2, %5 : vector<8x128xf32>
    %c0_8 = arith.constant 0 : index
    %c0_9 = arith.constant 0 : index
    %7 = vector.load %arg5[%c0_8, %c0_9] : memref<1x128xf32, #tpu.memory_space<vmem>>, vector<1x128xf32>
    %8 = vector.broadcast %7 : vector<1x128xf32> to vector<8x128xf32>
    %9 = arith.addf %6, %8 : vector<8x128xf32>
    %10 = math.exp %9 : vector<8x128xf32>
    %cst_10 = arith.constant 1.000000e+00 : f32
    %11 = vector.broadcast %cst_10 : f32 to vector<8x128xf32>
    %12 = arith.addf %11, %10 : vector<8x128xf32>
    %cst_11 = arith.constant 2.000000e+00 : f32
    %13 = vector.broadcast %cst_11 : f32 to vector<8x128xf32>
    %14 = arith.mulf %13, %9 : vector<8x128xf32>
    %15 = arith.mulf %12, %12 : vector<8x128xf32>
    %cst_12 = arith.constant 1.000000e+00 : f32
    %16 = vector.broadcast %cst_12 : f32 to vector<8x128xf32>
    %17 = arith.addf %16, %15 : vector<8x128xf32>
    %18 = arith.divf %14, %17 : vector<8x128xf32>
    %19 = arith.subf %9, %18 : vector<8x128xf32>
    %c0_13 = arith.constant 0 : index
    %c0_14 = arith.constant 0 : index
    %20 = vector.load %arg6[%c0_13, %c0_14] : memref<128x8xf32, #tpu.memory_space<vmem>>, vector<128x8xf32>
    %cst_15 = arith.constant dense<0.000000e+00> : vector<8x8xf32>
    %21 = tpu.matmul %19, %20, %cst_15 {dimension_numbers = #tpu.dot_dimension_numbers<[1], [0], [0], [1], [0, 0, 1, 1], [], []>} : vector<8x128xf32>, vector<128x8xf32>, vector<8x8xf32> -> vector<8x8xf32>
    %c0_16 = arith.constant 0 : index
    %c0_17 = arith.constant 0 : index
    %22 = memref.load %arg7[%c0_16, %c0_17] : memref<1x1xf32, #tpu.memory_space<smem>>
    %23 = vector.broadcast %22 : f32 to vector<8x8xf32>
    %24 = arith.addf %21, %23 : vector<8x8xf32>
    %c0_18 = arith.constant 0 : index
    %c0_19 = arith.constant 0 : index
    %25 = vector.load %arg8[%c0_18, %c0_19] : memref<8x8xf32, #tpu.memory_space<vmem>>, vector<8x8xf32>
    tpu.vector_store %arg8[%c0_18, %c0_19], %24 {strides = array<i32>} : memref<8x8xf32, #tpu.memory_space<vmem>>, vector<8x8xf32>,
    return
  }
  func.func @transform_0(%arg0: i32) -> (i32, i32) {
    %c0_i32 = arith.constant 0 : i32
    %c0_i32_0 = arith.constant 0 : i32
    return %arg0, %c0_i32 : i32, i32
  }
  func.func @transform_1(%arg0: i32) -> (i32, i32) {
    %c0_i32 = arith.constant 0 : i32
    %c0_i32_0 = arith.constant 0 : i32
    return %arg0, %c0_i32 : i32, i32
  }
  func.func @transform_2(%arg0: i32) -> (i32, i32) {
    %c0_i32 = arith.constant 0 : i32
    %c0_i32_0 = arith.constant 0 : i32
    %c0_i32_1 = arith.constant 0 : i32
    return %c0_i32, %c0_i32_0 : i32, i32
  }
  func.func @transform_3(%arg0: i32) -> (i32, i32) {
    %c0_i32 = arith.constant 0 : i32
    %c0_i32_0 = arith.constant 0 : i32
    %c0_i32_1 = arith.constant 0 : i32
    return %c0_i32, %c0_i32_0 : i32, i32
  }
  func.func @transform_4(%arg0: i32) -> (i32, i32) {
    %c0_i32 = arith.constant 0 : i32
    %c0_i32_0 = arith.constant 0 : i32
    %c0_i32_1 = arith.constant 0 : i32
    return %c0_i32, %c0_i32_0 : i32, i32
  }
  func.func @transform_5(%arg0: i32) -> (i32, i32) {
    %c0_i32 = arith.constant 0 : i32
    %c0_i32_0 = arith.constant 0 : i32
    %c0_i32_1 = arith.constant 0 : i32
    return %c0_i32, %c0_i32_0 : i32, i32
  }
  func.func @transform_6(%arg0: i32) -> (i32, i32) {
    %c0_i32 = arith.constant 0 : i32
    %c0_i32_0 = arith.constant 0 : i32
    %c0_i32_1 = arith.constant 0 : i32
    return %c0_i32, %c0_i32_0 : i32, i32
  }
  func.func @transform_7(%arg0: i32) -> (i32, i32) {
    %c0_i32 = arith.constant 0 : i32
    %c0_i32_0 = arith.constant 0 : i32
    return %arg0, %c0_i32 : i32, i32
  }
}

</mosaic_0001>

<llo_original>
// kernel: tpu_custom_call.1
$region0: #{tpu_custom_call.1}
  #allocation0 [shape = 'u32[]', space=smem, size = 0x4, offset = 0x4, fixed_abs, tag = 'smem constant byte address 0x4 - core index']
  #allocation1 [shape = 'u32[144,128]{1,0:T(1,128)}', space=vmem, size = 0x12000, scoped, tag = 'internal scratch']
  #allocation2 [shape = 'f32[1,1]{1,0:T(1,128)S(6)}', space=smem, size = 0x200, scoped, tag = 'scoped memory for tpu_custom_call.1']
  %s0 = inlined_call_operand.vmem [shape: f32[8,256], index: 0, kind: input, shape index: {}]
  %s1 = inlined_call_operand.vmem [shape: f32[8,256], index: 1, kind: input, shape index: {}]
  %s2 = inlined_call_operand.hbm [shape: f32[256,128], index: 2, kind: input, shape index: {}]
  %s3 = inlined_call_operand.hbm [shape: f32[256,128], index: 3, kind: input, shape index: {}]
  %s4 = inlined_call_operand.vmem [shape: f32[1,128], index: 4, kind: input, shape index: {}]
  %s5 = inlined_call_operand.vmem [shape: f32[128,8], index: 5, kind: input, shape index: {}]
  %s6 = inlined_call_operand.<no memory space> [shape: f32[1,1], index: 6, kind: input, shape index: {}]
  %s7 = inlined_call_operand.hbm [shape: f32[8,8], index: 7, kind: output, shape index: {}]
  %s8 = sld [smem:[#allocation0]]
  $region46: #{tpu_custom_call.1} parent=0
    _
  %s10 = ssub.s32 1, %s8
  %s11 = scalar_select 0, %s10, %s8
  %12 = sst [smem:[#allocation2]] %s6
  $region1: #{tpu_custom_call.1} parent=0
    #allocation3 [shape = 'u8[131072]{0}', space=vmem, size = 0x20000, scoped, tag = 'input window, operand 2, single buffered']
    #allocation4 [shape = 's32[1]{0}', space=sflag, size = 0x4, scoped, tag = 'scoped memory for tpu_custom_call.1']
    #allocation5 [shape = 's32[1]{0}', space=sflag, size = 0x4, scoped, tag = 'scoped memory for tpu_custom_call.1']
    #allocation6 [shape = 'u8[131072]{0}', space=vmem, size = 0x20000, scoped, tag = 'input window, operand 3, single buffered']
    #allocation7 [shape = 's32[1]{0}', space=sflag, size = 0x4, scoped, tag = 'scoped memory for tpu_custom_call.1']
    #allocation8 [shape = 'u8[4096]{0}', space=vmem, size = 0x1000, scoped, tag = 'output window, operand 0, single buffered']
    %13 = vsyncpa [#allocation4], 0
    %14 = vsyncpa [#allocation7], 0
    %15 = vsyncpa [#allocation5], 0
    // Predicated region
    $region2: #{tpu_custom_call.1} parent=1 // pred_check
      _
    $region3: #{tpu_custom_call.1} parent=1 // pred_check_branch
      %17 = sbr.rel (0) target = $region5
    $region4: #{tpu_custom_call.1} parent=1 // pred_region
      _
    $region5: #{tpu_custom_call.1} parent=1 // pred_fallthru
      _
    // Predicated region
    $region6: #{tpu_custom_call.1} parent=1 // pred_check
      _
    $region7: #{tpu_custom_call.1} parent=1 // pred_check_branch
      %19 = sbr.rel (0) target = $region9
    $region8: #{tpu_custom_call.1} parent=1 // pred_region
      _
    $region9: #{tpu_custom_call.1} parent=1 // pred_fallthru
      _
    // Predicated region
    $region10: #{tpu_custom_call.1} parent=1 // pred_check
      _
    $region11: #{tpu_custom_call.1} parent=1 // pred_check_branch
      %21 = sbr.rel (0) target = $region13
    $region12: #{tpu_custom_call.1} parent=1 // pred_region
      %s23 = ssub.s32 4096, 4096
      %24 = vsyncadd [#allocation4], %s23
      %s25 = sshll.u32 [#allocation3], 4
      %s26 = int_to_ptr.vmem [resolvable:$true] %s25
      %31 = dma.hbm_to_vmem [thread:$0]  %s2, 4096, %s26, [#allocation4], 128, 128, 8
    $region13: #{tpu_custom_call.1} parent=1 // pred_fallthru
      _
    // Predicated region
    $region14: #{tpu_custom_call.1} parent=1 // pred_check
      _
    $region15: #{tpu_custom_call.1} parent=1 // pred_check_branch
      %33 = sbr.rel (0) target = $region17
    $region16: #{tpu_custom_call.1} parent=1 // pred_region
      %s35 = ssub.s32 4096, 4096
      %36 = vsyncadd [#allocation7], %s35
      %s37 = sshll.u32 [#allocation6], 4
      %s38 = int_to_ptr.vmem [resolvable:$true] %s37
      %43 = dma.hbm_to_vmem [thread:$0]  %s3, 4096, %s38, [#allocation7], 128, 128, 8
    $region17: #{tpu_custom_call.1} parent=1 // pred_fallthru
      _
    // Predicated region
    $region18: #{tpu_custom_call.1} parent=1 // pred_check
      _
    $region19: #{tpu_custom_call.1} parent=1 // pred_check_branch
      %45 = sbr.rel (0) target = $region21
    $region20: #{tpu_custom_call.1} parent=1 // pred_region
      _
    $region21: #{tpu_custom_call.1} parent=1 // pred_fallthru
      _
    // Predicated region
    $region22: #{tpu_custom_call.1} parent=1 // pred_check
      _
    $region23: #{tpu_custom_call.1} parent=1 // pred_check_branch
      %47 = sbr.rel (0) target = $region25
    $region24: #{tpu_custom_call.1} parent=1 // pred_region
      _
    $region25: #{tpu_custom_call.1} parent=1 // pred_fallthru
      _
    // Predicated region
    $region26: #{tpu_custom_call.1} parent=1 // pred_check
      _
    $region27: #{tpu_custom_call.1} parent=1 // pred_check_branch
      %49 = sbr.rel (0) target = $region29
    $region28: #{tpu_custom_call.1} parent=1 // pred_region
      _
    $region29: #{tpu_custom_call.1} parent=1 // pred_fallthru
      _
    // Predicated region
    $region30: #{tpu_custom_call.1} parent=1 // pred_check
      _
    $region31: #{tpu_custom_call.1} parent=1 // pred_check_branch
      %51 = sbr.rel (0) target = $region33
    $region32: #{tpu_custom_call.1} parent=1 // pred_region
      %52 = dma.done [#allocation4], 4096
    $region33: #{tpu_custom_call.1} parent=1 // pred_fallthru
      _
    // Predicated region
    $region34: #{tpu_custom_call.1} parent=1 // pred_check
      _
    $region35: #{tpu_custom_call.1} parent=1 // pred_check_branch
      %54 = sbr.rel (0) target = $region37
    $region36: #{tpu_custom_call.1} parent=1 // pred_region
      %55 = dma.done [#allocation7], 4096
    $region37: #{tpu_custom_call.1} parent=1 // pred_fallthru
      _
    %v56 = vld [vmem:[%s0] sm:$0xff]
    %v57 = vld [vmem:[%s0 + $0x8] sm:$0xff]
    %v58 = vld [vmem:[#allocation3] sm:$0xff]
    %v59 = vld [vmem:[#allocation3 + $0x8] sm:$0xff]
    %v60 = vld [vmem:[#allocation3 + $0x10] sm:$0xff]
    %v61 = vld [vmem:[#allocation3 + $0x18] sm:$0xff]
    %v62 = vld [vmem:[#allocation3 + $0x20] sm:$0xff]
    %v63 = vld [vmem:[#allocation3 + $0x28] sm:$0xff]
    %v64 = vld [vmem:[#allocation3 + $0x30] sm:$0xff]
    %v65 = vld [vmem:[#allocation3 + $0x38] sm:$0xff]
    %v66 = vld [vmem:[#allocation3 + $0x40] sm:$0xff]
    %v67 = vld [vmem:[#allocation3 + $0x48] sm:$0xff]
    %v68 = vld [vmem:[#allocation3 + $0x50] sm:$0xff]
    %v69 = vld [vmem:[#allocation3 + $0x58] sm:$0xff]
    %v70 = vld [vmem:[#allocation3 + $0x60] sm:$0xff]
    %v71 = vld [vmem:[#allocation3 + $0x68] sm:$0xff]
    %v72 = vld [vmem:[#allocation3 + $0x70] sm:$0xff]
    %v73 = vld [vmem:[#allocation3 + $0x78] sm:$0xff]
    %v74 = vld [vmem:[#allocation3 + $0x80] sm:$0xff]
    %v75 = vld [vmem:[#allocation3 + $0x88] sm:$0xff]
    %v76 = vld [vmem:[#allocation3 + $0x90] sm:$0xff]
    %v77 = vld [vmem:[#allocation3 + $0x98] sm:$0xff]
    %v78 = vld [vmem:[#allocation3 + $0xa0] sm:$0xff]
    %v79 = vld [vmem:[#allocation3 + $0xa8] sm:$0xff]
    %v80 = vld [vmem:[#allocation3 + $0xb0] sm:$0xff]
    %v81 = vld [vmem:[#allocation3 + $0xb8] sm:$0xff]
    %v82 = vld [vmem:[#allocation3 + $0xc0] sm:$0xff]
    %v83 = vld [vmem:[#allocation3 + $0xc8] sm:$0xff]
    %v84 = vld [vmem:[#allocation3 + $0xd0] sm:$0xff]
    %v85 = vld [vmem:[#allocation3 + $0xd8] sm:$0xff]
    %v86 = vld [vmem:[#allocation3 + $0xe0] sm:$0xff]
    %v87 = vld [vmem:[#allocation3 + $0xe8] sm:$0xff]
    %v88 = vld [vmem:[#allocation3 + $0xf0] sm:$0xff]
    %v89 = vld [vmem:[#allocation3 + $0xf8] sm:$0xff]
    %v90 = vld [vmem:[%s1] sm:$0xff]
    %v91 = vld [vmem:[%s1 + $0x8] sm:$0xff]
    %v92 = vld [vmem:[#allocation6] sm:$0xff]
    %v93 = vld [vmem:[#allocation6 + $0x8] sm:$0xff]
    %v94 = vld [vmem:[#allocation6 + $0x10] sm:$0xff]
    %v95 = vld [vmem:[#allocation6 + $0x18] sm:$0xff]
    %v96 = vld [vmem:[#allocation6 + $0x20] sm:$0xff]
    %v97 = vld [vmem:[#allocation6 + $0x28] sm:$0xff]
    %v98 = vld [vmem:[#allocation6 + $0x30] sm:$0xff]
    %v99 = vld [vmem:[#allocation6 + $0x38] sm:$0xff]
    %v100 = vld [vmem:[#allocation6 + $0x40] sm:$0xff]
    %v101 = vld [vmem:[#allocation6 + $0x48] sm:$0xff]
    %v102 = vld [vmem:[#allocation6 + $0x50] sm:$0xff]
    %v103 = vld [vmem:[#allocation6 + $0x58] sm:$0xff]
    %v104 = vld [vmem:[#allocation6 + $0x60] sm:$0xff]
    %v105 = vld [vmem:[#allocation6 + $0x68] sm:$0xff]
    %v106 = vld [vmem:[#allocation6 + $0x70] sm:$0xff]
    %v107 = vld [vmem:[#allocation6 + $0x78] sm:$0xff]
    %v108 = vld [vmem:[#allocation6 + $0x80] sm:$0xff]
    %v109 = vld [vmem:[#allocation6 + $0x88] sm:$0xff]
    %v110 = vld [vmem:[#allocation6 + $0x90] sm:$0xff]
    %v111 = vld [vmem:[#allocation6 + $0x98] sm:$0xff]
    %v112 = vld [vmem:[#allocation6 + $0xa0] sm:$0xff]
    %v113 = vld [vmem:[#allocation6 + $0xa8] sm:$0xff]
    %v114 = vld [vmem:[#allocation6 + $0xb0] sm:$0xff]
    %v115 = vld [vmem:[#allocation6 + $0xb8] sm:$0xff]
    %v116 = vld [vmem:[#allocation6 + $0xc0] sm:$0xff]
    %v117 = vld [vmem:[#allocation6 + $0xc8] sm:$0xff]
    %v118 = vld [vmem:[#allocation6 + $0xd0] sm:$0xff]
    %v119 = vld [vmem:[#allocation6 + $0xd8] sm:$0xff]
    %v120 = vld [vmem:[#allocation6 + $0xe0] sm:$0xff]
    %v121 = vld [vmem:[#allocation6 + $0xe8] sm:$0xff]
    %v122 = vld [vmem:[#allocation6 + $0xf0] sm:$0xff]
    %v123 = vld [vmem:[#allocation6 + $0xf8] sm:$0xff]
    %124 = vmatprep.subr.mxu0 0.0
    %125 = vmatpush1.msra.mxu0 %v92
    %126 = vmatprep.subr.mxu0 0.0
    %127 = vmatpush1.msra.mxu0 %v93
    %128 = vmatprep.subr.mxu0 0.0
    %129 = vmatpush1.msra.mxu0 %v94
    %130 = vmatprep.subr.mxu0 0.0
    %131 = vmatpush1.msra.mxu0 %v95
    %132 = vmatprep.subr.mxu0 0.0
    %133 = vmatpush1.msra.mxu0 %v96
    %134 = vmatprep.subr.mxu0 0.0
    %135 = vmatpush1.msra.mxu0 %v97
    %136 = vmatprep.subr.mxu0 0.0
    %137 = vmatpush1.msra.mxu0 %v98
    %138 = vmatprep.subr.mxu0 0.0
    %139 = vmatpush1.msra.mxu0 %v99
    %140 = vmatprep.subr.mxu0 0.0
    %141 = vmatpush1.msra.mxu0 %v100
    %142 = vmatprep.subr.mxu0 0.0
    %143 = vmatpush1.msra.mxu0 %v101
    %144 = vmatprep.subr.mxu0 0.0
    %145 = vmatpush1.msra.mxu0 %v102
    %146 = vmatprep.subr.mxu0 0.0
    %147 = vmatpush1.msra.mxu0 %v103
    %148 = vmatprep.subr.mxu0 0.0
    %149 = vmatpush1.msra.mxu0 %v104
    %150 = vmatprep.subr.mxu0 0.0
    %151 = vmatpush1.msra.mxu0 %v105
    %152 = vmatprep.subr.mxu0 0.0
    %153 = vmatpush1.msra.mxu0 %v106
    %154 = vmatprep.subr.mxu0 0.0
    %155 = vmatpush1.msra.mxu0 %v107
    %156 = vmatprep.subr.mxu0 0.0
    %157 = vmatpush1.msra.mxu0 %v108
    %158 = vmatprep.subr.mxu0 0.0
    %159 = vmatpush1.msra.mxu0 %v109
    %160 = vmatprep.subr.mxu0 0.0
    %161 = vmatpush1.msra.mxu0 %v110
    %162 = vmatprep.subr.mxu0 0.0
    %163 = vmatpush1.msra.mxu0 %v111
    %164 = vmatprep.subr.mxu0 0.0
    %165 = vmatpush1.msra.mxu0 %v112
    %166 = vmatprep.subr.mxu0 0.0
    %167 = vmatpush1.msra.mxu0 %v113
    %168 = vmatprep.subr.mxu0 0.0
    %169 = vmatpush1.msra.mxu0 %v114
    %170 = vmatprep.subr.mxu0 0.0
    %171 = vmatpush1.msra.mxu0 %v115
    %172 = vmatprep.subr.mxu0 0.0
    %173 = vmatpush1.msra.mxu0 %v116
    %174 = vmatprep.subr.mxu0 0.0
    %175 = vmatpush1.msra.mxu0 %v117
    %176 = vmatprep.subr.mxu0 0.0
    %177 = vmatpush1.msra.mxu0 %v118
    %178 = vmatprep.subr.mxu0 0.0
    %179 = vmatpush1.msra.mxu0 %v119
    %180 = vmatprep.subr.mxu0 0.0
    %181 = vmatpush1.msra.mxu0 %v120
    %182 = vmatprep.subr.mxu0 0.0
    %183 = vmatpush1.msra.mxu0 %v121
    %184 = vmatprep.subr.mxu0 0.0
    %185 = vmatpush1.msra.mxu0 %v122
    %186 = vmatprep.subr.mxu0 0.0
    %187 = vmatpush1.msra.mxu0 %v123
    %188 = vmatprep.mubr.f32.mxu0 %v91
    %189 = vmatmul.mubr.f32.gmra.mrb[0].mxu0 %v90
    %v190 = vpop.f32.mrb[0].mxu0
    %v191 = vadd.f32 0.0, %v190
    %v192 = vpop.f32.mrb[0].mxu0
    %193 = vdwg.mxu0
    %194 = vmatprep.subr.mxu0 0.0
    %195 = vmatpush1.msra.mxu0 %v58
    %196 = vmatprep.subr.mxu0 0.0
    %197 = vmatpush1.msra.mxu0 %v59
    %198 = vmatprep.subr.mxu0 0.0
    %199 = vmatpush1.msra.mxu0 %v60
    %200 = vmatprep.subr.mxu0 0.0
    %201 = vmatpush1.msra.mxu0 %v61
    %202 = vmatprep.subr.mxu0 0.0
    %203 = vmatpush1.msra.mxu0 %v62
    %204 = vmatprep.subr.mxu0 0.0
    %205 = vmatpush1.msra.mxu0 %v63
    %206 = vmatprep.subr.mxu0 0.0
    %207 = vmatpush1.msra.mxu0 %v64
    %208 = vmatprep.subr.mxu0 0.0
    %209 = vmatpush1.msra.mxu0 %v65
    %210 = vmatprep.subr.mxu0 0.0
    %211 = vmatpush1.msra.mxu0 %v66
    %212 = vmatprep.subr.mxu0 0.0
    %213 = vmatpush1.msra.mxu0 %v67
    %214 = vmatprep.subr.mxu0 0.0
    %215 = vmatpush1.msra.mxu0 %v68
    %216 = vmatprep.subr.mxu0 0.0
    %217 = vmatpush1.msra.mxu0 %v69
    %218 = vmatprep.subr.mxu0 0.0
    %219 = vmatpush1.msra.mxu0 %v70
    %220 = vmatprep.subr.mxu0 0.0
    %221 = vmatpush1.msra.mxu0 %v71
    %222 = vmatprep.subr.mxu0 0.0
    %223 = vmatpush1.msra.mxu0 %v72
    %224 = vmatprep.subr.mxu0 0.0
    %225 = vmatpush1.msra.mxu0 %v73
    %226 = vmatprep.subr.mxu0 0.0
    %227 = vmatpush1.msra.mxu0 %v74
    %228 = vmatprep.subr.mxu0 0.0
    %229 = vmatpush1.msra.mxu0 %v75
    %230 = vmatprep.subr.mxu0 0.0
    %231 = vmatpush1.msra.mxu0 %v76
    %232 = vmatprep.subr.mxu0 0.0
    %233 = vmatpush1.msra.mxu0 %v77
    %234 = vmatprep.subr.mxu0 0.0
    %235 = vmatpush1.msra.mxu0 %v78
    %236 = vmatprep.subr.mxu0 0.0
    %237 = vmatpush1.msra.mxu0 %v79
    %238 = vmatprep.subr.mxu0 0.0
    %239 = vmatpush1.msra.mxu0 %v80
    %240 = vmatprep.subr.mxu0 0.0
    %241 = vmatpush1.msra.mxu0 %v81
    %242 = vmatprep.subr.mxu0 0.0
    %243 = vmatpush1.msra.mxu0 %v82
    %244 = vmatprep.subr.mxu0 0.0
    %245 = vmatpush1.msra.mxu0 %v83
    %246 = vmatprep.subr.mxu0 0.0
    %247 = vmatpush1.msra.mxu0 %v84
    %248 = vmatprep.subr.mxu0 0.0
    %249 = vmatpush1.msra.mxu0 %v85
    %250 = vmatprep.subr.mxu0 0.0
    %251 = vmatpush1.msra.mxu0 %v86
    %252 = vmatprep.subr.mxu0 0.0
    %253 = vmatpush1.msra.mxu0 %v87
    %254 = vmatprep.subr.mxu0 0.0
    %255 = vmatpush1.msra.mxu0 %v88
    %256 = vmatprep.subr.mxu0 0.0
    %257 = vmatpush1.msra.mxu0 %v89
    %258 = vmatprep.mubr.f32.mxu0 %v57
    %259 = vmatmul.mubr.f32.gmra.mrb[0].mxu0 %v56
    %v260 = vpop.f32.mrb[0].mxu0
    %v261 = vadd.f32 %v191, %v260
    %v262 = vpop.f32.mrb[0].mxu0
    %263 = vdwg.mxu0
    %v264 = vld [vmem:[%s4] sm:$0x1]
    %v266 = vlaneseq
    %v267 = vshrl.u32 %v266, 7
    %v268 = vsub.s32 0, %v267
    %v269 = vrot.slane %v264, %v268
    %v271 = vadd.f32 %v261, %v269
    %v272 = vmul.f32 %v271, 1.442695
    %v273 = vpow.pop %v272
    %v274 = vadd.f32 %v273, 1.0
    %v275 = vmul.f32 %v271, 2.0
    %v276 = vmul.f32 %v274, %v274
    %v277 = vadd.f32 %v276, 1.0
    %v278 = vrcp.pop %v277
    %v279 = vmul.f32 %v275, %v278
    %v280 = vsub.f32 %v271, %v279
    %v281 = vld [vmem:[%s5] sm:$0xff]
    %v282 = vld [vmem:[%s5 + $0x8] sm:$0xff]
    %v283 = vld [vmem:[%s5 + $0x10] sm:$0xff]
    %v284 = vld [vmem:[%s5 + $0x18] sm:$0xff]
    %v285 = vld [vmem:[%s5 + $0x20] sm:$0xff]
    %v286 = vld [vmem:[%s5 + $0x28] sm:$0xff]
    %v287 = vld [vmem:[%s5 + $0x30] sm:$0xff]
    %v288 = vld [vmem:[%s5 + $0x38] sm:$0xff]
    %v289 = vld [vmem:[%s5 + $0x40] sm:$0xff]
    %v290 = vld [vmem:[%s5 + $0x48] sm:$0xff]
    %v291 = vld [vmem:[%s5 + $0x50] sm:$0xff]
    %v292 = vld [vmem:[%s5 + $0x58] sm:$0xff]
    %v293 = vld [vmem:[%s5 + $0x60] sm:$0xff]
    %v294 = vld [vmem:[%s5 + $0x68] sm:$0xff]
    %v295 = vld [vmem:[%s5 + $0x70] sm:$0xff]
    %v296 = vld [vmem:[%s5 + $0x78] sm:$0xff]
    %s297 = sld [smem:[#allocation2]]
    %v298 = vstv %s297
    %299 = vmatprep.subr.mxu0 0.0
    %300 = vmatpush1.msra.mxu0 %v281
    %301 = vmatprep.subr.mxu0 0.0
    %302 = vmatpush1.msra.mxu0 %v282
    %303 = vmatprep.subr.mxu0 0.0
    %304 = vmatpush1.msra.mxu0 %v283
    %305 = vmatprep.subr.mxu0 0.0
    %306 = vmatpush1.msra.mxu0 %v284
    %307 = vmatprep.subr.mxu0 0.0
    %308 = vmatpush1.msra.mxu0 %v285
    %309 = vmatprep.subr.mxu0 0.0
    %310 = vmatpush1.msra.mxu0 %v286
    %311 = vmatprep.subr.mxu0 0.0
    %312 = vmatpush1.msra.mxu0 %v287
    %313 = vmatprep.subr.mxu0 0.0
    %314 = vmatpush1.msra.mxu0 %v288
    %315 = vmatprep.subr.mxu0 0.0
    %316 = vmatpush1.msra.mxu0 %v289
    %317 = vmatprep.subr.mxu0 0.0
    %318 = vmatpush1.msra.mxu0 %v290
    %319 = vmatprep.subr.mxu0 0.0
    %320 = vmatpush1.msra.mxu0 %v291
    %321 = vmatprep.subr.mxu0 0.0
    %322 = vmatpush1.msra.mxu0 %v292
    %323 = vmatprep.subr.mxu0 0.0
    %324 = vmatpush1.msra.mxu0 %v293
    %325 = vmatprep.subr.mxu0 0.0
    %326 = vmatpush1.msra.mxu0 %v294
    %327 = vmatprep.subr.mxu0 0.0
    %328 = vmatpush1.msra.mxu0 %v295
    %329 = vmatprep.subr.mxu0 0.0
    %330 = vmatpush1.msra.mxu0 %v296
    %331 = vmatprep.subr.mxu0 0.0
    %332 = vmatpush1.msra.mxu0 0.0
    %333 = vmatprep.subr.mxu0 0.0
    %334 = vmatpush1.msra.mxu0 0.0
    %335 = vmatprep.subr.mxu0 0.0
    %336 = vmatpush1.msra.mxu0 0.0
    %337 = vmatprep.subr.mxu0 0.0
    %338 = vmatpush1.msra.mxu0 0.0
    %339 = vmatprep.subr.mxu0 0.0
    %340 = vmatpush1.msra.mxu0 0.0
    %341 = vmatprep.subr.mxu0 0.0
    %342 = vmatpush1.msra.mxu0 0.0
    %343 = vmatprep.subr.mxu0 0.0
    %344 = vmatpush1.msra.mxu0 0.0
    %345 = vmatprep.subr.mxu0 0.0
    %346 = vmatpush1.msra.mxu0 0.0
    %347 = vmatprep.subr.mxu0 0.0
    %348 = vmatpush1.msra.mxu0 0.0
    %349 = vmatprep.subr.mxu0 0.0
    %350 = vmatpush1.msra.mxu0 0.0
    %351 = vmatprep.subr.mxu0 0.0
    %352 = vmatpush1.msra.mxu0 0.0
    %353 = vmatprep.subr.mxu0 0.0
    %354 = vmatpush1.msra.mxu0 0.0
    %355 = vmatprep.subr.mxu0 0.0
    %356 = vmatpush1.msra.mxu0 0.0
    %357 = vmatprep.subr.mxu0 0.0
    %358 = vmatpush1.msra.mxu0 0.0
    %359 = vmatprep.subr.mxu0 0.0
    %360 = vmatpush1.msra.mxu0 0.0
    %361 = vmatprep.subr.mxu0 0.0
    %362 = vmatpush1.msra.mxu0 0.0
    %363 = vmatprep.mubr.f32.mxu0 0.0
    %364 = vmatmul.mubr.f32.gmra.mrb[0].mxu0 %v280
    %v365 = vpop.f32.mrb[0].mxu0
    %v366 = vadd.f32 %v298, %v365
    %v367 = vpop.f32.mrb[0].mxu0
    %368 = vdwg.mxu0
    %vm369 = vcmask 64512
    %370 = vst.msk [vmem:[#allocation8] sm:$0xff] %vm369, %v366
    // Predicated region
    $region38: #{tpu_custom_call.1} parent=1 // pred_check
      _
    $region39: #{tpu_custom_call.1} parent=1 // pred_check_branch
      %372 = sbr.rel (0) target = $region41
    $region40: #{tpu_custom_call.1} parent=1 // pred_region
      %s374 = ssub.s32 128, 128
      %375 = vsyncadd [#allocation5], %s374
      %s377 = sshll.u32 [#allocation8], 4
      %s378 = int_to_ptr.vmem [resolvable:$true] %s377
      %380 = dma.vmem_to_hbm [thread:$0]  %s378, 128, %s7, [#allocation5]
    $region41: #{tpu_custom_call.1} parent=1 // pred_fallthru
      _
    // Predicated region
    $region42: #{tpu_custom_call.1} parent=1 // pred_check
      _
    $region43: #{tpu_custom_call.1} parent=1 // pred_check_branch
      %382 = sbr.rel (0) target = $region45
    $region44: #{tpu_custom_call.1} parent=1 // pred_region
      %383 = dma.done [#allocation5], 128
    $region45: #{tpu_custom_call.1} parent=1 // pred_fallthru
      _
    %384 = vsyncpa [#allocation4], 1
    %385 = vsyncpa [#allocation7], 1
    %386 = vsyncpa [#allocation5], 1

</llo_original>
